<compile_context>
chip_gen: v7x
topology: tpu7x:2x2x1
jax: 0.10.0
libtpu: 0.0.40
codegen_flags: <defaults>
</compile_context>

<pallas_src>
import functools

import numpy as np
import jax
import jax.numpy as jnp
from jax.experimental import pallas as pl
from jax.experimental.pallas import tpu as pltpu


# ----------------------------------------------------------------------------
# Pallas kernel: one (TM, TN) tile of  out = x_flat @ gather_matrix
# ----------------------------------------------------------------------------
def _pooled_matmul_kernel(x_ref, m_ref, o_ref, acc_ref):
    """x_ref:   (TM, TK) bf16  rows = batch*channel, cols = input-pixel K slab
    m_ref:   (TK, TN) bf16  gather-matrix slab (precomputed in the wrapper)
    o_ref:   (TM, TN) f32   pooled output tile
    acc_ref: (TM, TN) f32   VMEM accumulator across the reduction grid axis
    """
    @pl.when(pl.program_id(2) == 0)
    def _():
        acc_ref[...] = jnp.zeros_like(acc_ref)

    acc_ref[...] += jnp.dot(x_ref[...], m_ref[...],
                            preferred_element_type=jnp.float32)

    @pl.when(pl.program_id(2) == pl.num_programs(2) - 1)
    def _():
        o_ref[...] = acc_ref[...].astype(o_ref.dtype)


# ----------------------------------------------------------------------------
# Wrapper glue: gather-matrix precompute (plain JAX) + tiling + reshapes
# ----------------------------------------------------------------------------
def _round_up(v, m):
    return (v + m - 1) // m * m


def _build_gather_matrix(sample_map, ih, iw, kernel_size, interpolation):
    """Dense gather matrix M[IH*IW, OH*OW] so that  out_flat = x_flat @ M.

    sample_map: (OH, OW, kernel_size, 2) with (x, y) coords in the input image.
    """
    oh, ow, k, _ = sample_map.shape
    ohw = oh * ow
    ihw = ih * iw
    sm = sample_map.reshape(ohw, k, 2).astype(jnp.float32)
    sx, sy = sm[..., 0], sm[..., 1]

    if interpolation == "nearest":
        # floor(x + 0.5): round-half-up, matching the reference CUDA op
        # (jnp.round would be round-half-to-even).
        cx = jnp.floor(sx + 0.5).astype(jnp.int32)[..., None]        # (OHW, K, 1)
        cy = jnp.floor(sy + 0.5).astype(jnp.int32)[..., None]
        cw = jnp.ones_like(sx)[..., None]
    elif interpolation == "bilinear":
        x0f = jnp.floor(sx)
        y0f = jnp.floor(sy)
        dx = sx - x0f
        dy = sy - y0f
        x0 = x0f.astype(jnp.int32)
        y0 = y0f.astype(jnp.int32)
        x1 = x0 + 1
        y1 = y0 + 1
        cx = jnp.stack([x0, x1, x0, x1], axis=-1)                    # (OHW, K, 4)
        cy = jnp.stack([y0, y0, y1, y1], axis=-1)
        cw = jnp.stack([(1.0 - dx) * (1.0 - dy), dx * (1.0 - dy),
                        (1.0 - dx) * dy, dx * dy], axis=-1)
    else:
        # TODO(synk): 'bispherical' interpolation mode is not implemented.
        raise ValueError("Unsupported interpolation type: %s" % interpolation)

    in_bounds = (cx >= 0) & (cx < iw) & (cy >= 0) & (cy < ih)
    wts = jnp.where(in_bounds, cw, 0.0) / float(kernel_size)
    src = (jnp.clip(cy, 0, ih - 1) * iw + jnp.clip(cx, 0, iw - 1)).astype(jnp.int32)

    kc = src.shape[1] * src.shape[2]
    src = src.reshape(ohw * kc)
    wts = wts.reshape(ohw * kc).astype(jnp.float32)
    dst = jnp.repeat(jnp.arange(ohw, dtype=jnp.int32), kc)
    return jnp.zeros((ihw, ohw), jnp.float32).at[src, dst].add(wts)


@functools.partial(jax.jit, static_argnames=("kernel_size", "interpolation"))
def mapped_avg_pool(x, sample_map, kernel_size, interpolation="bilinear"):
    """x: (B, C, IH, IW); sample_map: (OH, OW, kernel_size, 2) -> (B, C, OH, OW)."""
    b, c, ih, iw = x.shape
    oh, ow, k, two = sample_map.shape
    assert k == kernel_size and two == 2
    bc, ihw, ohw = b * c, ih * iw, oh * ow

    # Data-independent gather matrix, built once per sample_map with plain JAX.
    gmat = _build_gather_matrix(sample_map, ih, iw, kernel_size, interpolation)

    # MXU-friendly tiles: (8, 128)-aligned, capped at 256/512 — suits the
    # 4x128^2 (v5e) and 2x256^2 (v6e/v7x) MXUs and keeps per-step VMEM
    # (double-buffered bf16 x/M slabs + f32 acc/out) around ~3 MiB, far below
    # v7x's 64 MiB physical VMEM.
    tm = min(256, _round_up(bc, 8))
    tk = min(512, _round_up(ihw, 128))
    tn = min(512, _round_up(ohw, 128))
    bc_p = _round_up(bc, tm)
    ihw_p = _round_up(ihw, tk)
    ohw_p = _round_up(ohw, tn)

    # bf16 operands (f32 accumulation in-kernel) for the bf16-native MXU.
    # Zero-padding the reduction (IHW) dim is exact; padded rows/cols are
    # sliced off below.
    x_pad = jnp.pad(x.reshape(bc, ihw).astype(jnp.bfloat16),
                    ((0, bc_p - bc), (0, ihw_p - ihw)))
    m_pad = jnp.pad(gmat.astype(jnp.bfloat16),
                    ((0, ihw_p - ihw), (0, ohw_p - ohw)))

    out_flat = pl.pallas_call(
        _pooled_matmul_kernel,
        out_shape=jax.ShapeDtypeStruct((bc_p, ohw_p), jnp.float32),
        grid_spec=pltpu.PrefetchScalarGridSpec(
            num_scalar_prefetch=0,
            grid=(bc_p // tm, ohw_p // tn, ihw_p // tk),
            in_specs=[
                pl.BlockSpec((tm, tk), lambda i, j, kk: (i, kk)),
                pl.BlockSpec((tk, tn), lambda i, j, kk: (kk, j)),
            ],
            out_specs=pl.BlockSpec((tm, tn), lambda i, j, kk: (i, j)),
            scratch_shapes=[pltpu.VMEM((tm, tn), jnp.float32)],
        ),
        compiler_params=pltpu.CompilerParams(
            # BC / OHW tiles are independent (megacore-parallel on v7x);
            # the IHW reduction axis carries the accumulator -> arbitrary.
            dimension_semantics=("parallel", "parallel", "arbitrary"),
            vmem_limit_bytes=32 * 1024 * 1024,
        ),
        cost_estimate=pl.CostEstimate(
            flops=2 * bc_p * ihw_p * ohw_p,
            transcendentals=0,
            bytes_accessed=(bc_p * ihw_p * 2 + ihw_p * ohw_p * 2
                            + bc_p * ohw_p * 4),
        ),
    )(x_pad, m_pad)

    return out_flat[:bc, :ohw].reshape(b, c, oh, ow).astype(x.dtype)


class MappedAvgPool:
    """JAX/Pallas equivalent of the PyTorch MappedAvgPool module (forward only)."""

    def __init__(self, kernel_size, interpolation="bilinear"):
        # TODO(synk): 'bispherical' interpolation mode is not implemented.
        assert interpolation in ("nearest", "bilinear"), "Unsupported interpolation type"
        self.kernel_size = kernel_size
        self.interpolation = interpolation

    def __call__(self, x, sample_map, interp_weights=None):
        # TODO(synk): weighted_mapped_avg_pool (interp_weights != None) not implemented.
        assert interp_weights is None
        return mapped_avg_pool(x, sample_map, self.kernel_size, self.interpolation)


# ----------------------------------------------------------------------------
# Independent numpy reference (direct bilinear gather + mean) for verification
# ----------------------------------------------------------------------------
def _ref_numpy(x, sample_map, kernel_size, interpolation="bilinear"):
    x = np.asarray(x, dtype=np.float64)
    sm = np.asarray(sample_map, dtype=np.float64)
    b, c, ih, iw = x.shape
    oh, ow, k, _ = sm.shape
    out = np.zeros((b, c, oh, ow), dtype=np.float64)
    for i in range(oh):
        for j in range(ow):
            for kk in range(kernel_size):
                sx, sy = sm[i, j, kk]
                if interpolation == "nearest":
                    corners = [(int(np.floor(sx + 0.5)), int(np.floor(sy + 0.5)), 1.0)]
                else:
                    x0 = int(np.floor(sx))
                    y0 = int(np.floor(sy))
                    dx = sx - x0
                    dy = sy - y0
                    corners = [
                        (x0, y0, (1 - dx) * (1 - dy)),
                        (x0 + 1, y0, dx * (1 - dy)),
                        (x0, y0 + 1, (1 - dx) * dy),
                        (x0 + 1, y0 + 1, dx * dy),
                    ]
                for cx, cy, cw in corners:
                    if 0 <= cx < iw and 0 <= cy < ih:
                        out[:, :, i, j] += cw * x[:, :, cy, cx] / kernel_size
    return out.astype(np.float32)


# ----------------------------------------------------------------------------
# Main
# ----------------------------------------------------------------------------
if __name__ == "__main__":
    B, C, IH, IW = 2, 4, 16, 16
    K = 4
    OH, OW = 8, 8

    key = jax.random.PRNGKey(0)
    kx, km = jax.random.split(key)
    x = jax.random.normal(kx, (B, C, IH, IW), dtype=jnp.float32)
    # sample_map holds (x, y) coordinates in the *input* grid; slightly
    # out-of-bounds coords exercise the dropped-corner path.
    sample_map = jax.random.uniform(
        km, (OH, OW, K, 2), dtype=jnp.float32,
        minval=-0.5, maxval=float(max(IH, IW)) - 0.5)

    pool = MappedAvgPool(kernel_size=K, interpolation="bilinear")
    out = pool(x, sample_map)
    out = jax.block_until_ready(out)

    ref = _ref_numpy(x, sample_map, K, "bilinear")
    assert out.shape == (B, C, OH, OW)
    err = float(np.max(np.abs(np.asarray(out, dtype=np.float64) - ref)))
    # Tolerance accounts for bf16 matmul operands (f32 accumulation).
    assert np.allclose(np.asarray(out), ref, rtol=5e-2, atol=5e-2), (
        "mismatch vs reference: max abs err %g" % err)

    print("KERNEL_OK")
</pallas_src>

<mosaic_0001>
module attributes {stable_mosaic.version = 11 : i64} {
  func.func private @main(%arg0: i32) attributes {dimension_semantics = [#tpu.dimension_semantics<core_parallel>], iteration_bounds = array<i64: 2>, tpu.core_type = #tpu.core_type<sc_scalar_subcore>, window_params = []} {
    return
  }
}

module attributes {stable_mosaic.version = 11 : i64} {
  func.func private @main(%arg0: i32) attributes {dimension_semantics = [#tpu.dimension_semantics<core_parallel>], iteration_bounds = array<i64: 2>, tpu.core_type = #tpu.core_type<sc_scalar_subcore>, window_params = []} {
    return
  }
}

module attributes {stable_mosaic.version = 11 : i64} {
  func.func @_pooled_matmul_kernel(%arg0: i32, %arg1: i32, %arg2: i32, %arg3: memref<8x256xbf16, #tpu.memory_space<vmem>>, %arg4: memref<256x128xbf16, #tpu.memory_space<vmem>>, %arg5: memref<8x128xf32, #tpu.memory_space<vmem>>, %arg6: memref<8x128xf32, #tpu.memory_space<vmem>>) attributes {dimension_semantics = [#tpu.dimension_semantics<parallel>, #tpu.dimension_semantics<parallel>, #tpu.dimension_semantics<arbitrary>], iteration_bounds = array<i64: 1, 1, 1>, scalar_prefetch = 0 : i64, scratch_operands = 1 : i64, tpu.core_type = #tpu.core_type<tc>, window_params = [{transform_indices = @transform_0, window_bounds = array<i64: 8, 256>}, {transform_indices = @transform_1, window_bounds = array<i64: 256, 128>}, {transform_indices = @transform_2, window_bounds = array<i64: 8, 128>}]} {
    %c0_i32 = arith.constant 0 : i32
    %0 = arith.cmpi eq, %arg2, %c0_i32 : i32
    %1 = arith.extui %0 : i1 to i32
    %c0_i32_0 = arith.constant 0 : i32
    %2 = arith.cmpi ne, %1, %c0_i32_0 : i32
    scf.if %2 {
      %cst_10 = arith.constant 0.000000e+00 : f32
      %12 = vector.broadcast %cst_10 : f32 to vector<8x128xf32>
      %c0_11 = arith.constant 0 : index
      %c0_12 = arith.constant 0 : index
      %13 = vector.load %arg6[%c0_11, %c0_12] : memref<8x128xf32, #tpu.memory_space<vmem>>, vector<8x128xf32>
      tpu.vector_store %arg6[%c0_11, %c0_12], %12 {strides = array<i32>} : memref<8x128xf32, #tpu.memory_space<vmem>>, vector<8x128xf32>,
    } else {
    }
    %c0 = arith.constant 0 : index
    %c0_1 = arith.constant 0 : index
    %3 = vector.load %arg6[%c0, %c0_1] : memref<8x128xf32, #tpu.memory_space<vmem>>, vector<8x128xf32>
    %c0_2 = arith.constant 0 : index
    %c0_3 = arith.constant 0 : index
    %4 = vector.load %arg3[%c0_2, %c0_3] : memref<8x256xbf16, #tpu.memory_space<vmem>>, vector<8x256xbf16>
    %c0_4 = arith.constant 0 : index
    %c0_5 = arith.constant 0 : index
    %5 = vector.load %arg4[%c0_4, %c0_5] : memref<256x128xbf16, #tpu.memory_space<vmem>>, vector<256x128xbf16>
    %cst = arith.constant dense<0.000000e+00> : vector<8x128xf32>
    %6 = tpu.matmul %4, %5, %cst {dimension_numbers = #tpu.dot_dimension_numbers<[1], [0], [0], [1], [0, 0, 1, 1], [], []>} : vector<8x256xbf16>, vector<256x128xbf16>, vector<8x128xf32> -> vector<8x128xf32>
    %7 = arith.addf %3, %6 : vector<8x128xf32>
    %c0_6 = arith.constant 0 : index
    %c0_7 = arith.constant 0 : index
    %8 = vector.load %arg6[%c0_6, %c0_7] : memref<8x128xf32, #tpu.memory_space<vmem>>, vector<8x128xf32>
    tpu.vector_store %arg6[%c0_6, %c0_7], %7 {strides = array<i32>} : memref<8x128xf32, #tpu.memory_space<vmem>>, vector<8x128xf32>,
    %c0_i32_8 = arith.constant 0 : i32
    %9 = arith.cmpi eq, %arg2, %c0_i32_8 : i32
    %10 = arith.extui %9 : i1 to i32
    %c0_i32_9 = arith.constant 0 : i32
    %11 = arith.cmpi ne, %10, %c0_i32_9 : i32
    scf.if %11 {
      %c0_10 = arith.constant 0 : index
      %c0_11 = arith.constant 0 : index
      %12 = vector.load %arg6[%c0_10, %c0_11] : memref<8x128xf32, #tpu.memory_space<vmem>>, vector<8x128xf32>
      %c0_12 = arith.constant 0 : index
      %c0_13 = arith.constant 0 : index
      %13 = vector.load %arg5[%c0_12, %c0_13] : memref<8x128xf32, #tpu.memory_space<vmem>>, vector<8x128xf32>
      tpu.vector_store %arg5[%c0_12, %c0_13], %12 {strides = array<i32>} : memref<8x128xf32, #tpu.memory_space<vmem>>, vector<8x128xf32>,
    } else {
    }
    return
  }
  func.func @transform_0(%arg0: i32, %arg1: i32, %arg2: i32) -> (i32, i32) {
    %c0_i32 = arith.constant 0 : i32
    return %arg0, %arg2 : i32, i32
  }
  func.func @transform_1(%arg0: i32, %arg1: i32, %arg2: i32) -> (i32, i32) {
    %c0_i32 = arith.constant 0 : i32
    return %arg2, %arg1 : i32, i32
  }
  func.func @transform_2(%arg0: i32, %arg1: i32, %arg2: i32) -> (i32, i32) {
    %c0_i32 = arith.constant 0 : i32
    return %arg0, %arg1 : i32, i32
  }
}

</mosaic_0001>

<llo_original>
// kernel: mapped_avg_pool.1
$region0: #{mapped_avg_pool.1}
  #allocation0 [shape = 'u32[]', space=smem, size = 0x4, offset = 0x4, fixed_abs, tag = 'smem constant byte address 0x4 - core index']
  #allocation1 [shape = 'u32[144,128]{1,0:T(1,128)}', space=vmem, size = 0x12000, scoped, tag = 'internal scratch']
  #allocation2 [shape = 'f32[8,128]{1,0:T(8,128)}', space=vmem, size = 0x1000, scoped, tag = 'scratch operand']
  %s0 = inlined_call_operand.vmem [shape: bf16[8,256], index: 0, kind: input, shape index: {}]
  %s1 = inlined_call_operand.vmem [shape: bf16[256,128], index: 1, kind: input, shape index: {}]
  %s2 = inlined_call_operand.vmem [shape: f32[8,128], index: 2, kind: output, shape index: {}]
  %s3 = sld [smem:[#allocation0]]
  $region26: #{mapped_avg_pool.1} parent=0
    _
  %s5 = ssub.s32 1, %s3
  %s6 = scalar_select 0, %s5, %s3
  // Predicated region
  $region2: #{mapped_avg_pool.1} parent=0 // pred_check
    _
  $region3: #{mapped_avg_pool.1} parent=0 // pred_check_branch
    %8 = sbr.rel (0) target = $region5
  $region4: #{mapped_avg_pool.1} parent=0 // pred_region
    _
  $region5: #{mapped_avg_pool.1} parent=0 // pred_fallthru
    _
  // Predicated region
  $region6: #{mapped_avg_pool.1} parent=0 // pred_check
    _
  $region7: #{mapped_avg_pool.1} parent=0 // pred_check_branch
    %10 = sbr.rel (0) target = $region9
  $region8: #{mapped_avg_pool.1} parent=0 // pred_region
    _
  $region9: #{mapped_avg_pool.1} parent=0 // pred_fallthru
    _
  %p12 = scmp.eq.s32.totalorder 0, 0
  // Predicated region
  $region10: #{mapped_avg_pool.1} parent=0 // pred_check
    %p13 = pneg %p12
  $region11: #{mapped_avg_pool.1} parent=0 // pred_check_branch
    %15 = sbr.rel (%p13) target = $region13
  $region12: #{mapped_avg_pool.1} parent=0 // pred_region
    %16 = vst [vmem:[#allocation2] sm:$0xff] 0.0
  $region13: #{mapped_avg_pool.1} parent=0 // pred_fallthru
    _
  %v17 = vld [vmem:[#allocation2] sm:$0xff]
  %v18 = vld [vmem:[%s0] sm:$0xff]
  %v19 = vld [vmem:[%s1] sm:$0xf]
  %v20 = vld [vmem:[%s1 + $0x4] sm:$0xf]
  %v21 = vld [vmem:[%s1 + $0x8] sm:$0xf]
  %v22 = vld [vmem:[%s1 + $0xc] sm:$0xf]
  %v23 = vld [vmem:[%s1 + $0x10] sm:$0xf]
  %v24 = vld [vmem:[%s1 + $0x14] sm:$0xf]
  %v25 = vld [vmem:[%s1 + $0x18] sm:$0xf]
  %v26 = vld [vmem:[%s1 + $0x1c] sm:$0xf]
  %v27 = vld [vmem:[%s1 + $0x20] sm:$0xf]
  %v28 = vld [vmem:[%s1 + $0x24] sm:$0xf]
  %v29 = vld [vmem:[%s1 + $0x28] sm:$0xf]
  %v30 = vld [vmem:[%s1 + $0x2c] sm:$0xf]
  %v31 = vld [vmem:[%s1 + $0x30] sm:$0xf]
  %v32 = vld [vmem:[%s1 + $0x34] sm:$0xf]
  %v33 = vld [vmem:[%s1 + $0x38] sm:$0xf]
  %v34 = vld [vmem:[%s1 + $0x3c] sm:$0xf]
  %v35 = vld [vmem:[%s1 + $0x40] sm:$0xf]
  %v36 = vld [vmem:[%s1 + $0x44] sm:$0xf]
  %v37 = vld [vmem:[%s1 + $0x48] sm:$0xf]
  %v38 = vld [vmem:[%s1 + $0x4c] sm:$0xf]
  %v39 = vld [vmem:[%s1 + $0x50] sm:$0xf]
  %v40 = vld [vmem:[%s1 + $0x54] sm:$0xf]
  %v41 = vld [vmem:[%s1 + $0x58] sm:$0xf]
  %v42 = vld [vmem:[%s1 + $0x5c] sm:$0xf]
  %v43 = vld [vmem:[%s1 + $0x60] sm:$0xf]
  %v44 = vld [vmem:[%s1 + $0x64] sm:$0xf]
  %v45 = vld [vmem:[%s1 + $0x68] sm:$0xf]
  %v46 = vld [vmem:[%s1 + $0x6c] sm:$0xf]
  %v47 = vld [vmem:[%s1 + $0x70] sm:$0xf]
  %v48 = vld [vmem:[%s1 + $0x74] sm:$0xf]
  %v49 = vld [vmem:[%s1 + $0x78] sm:$0xf]
  %v50 = vld [vmem:[%s1 + $0x7c] sm:$0xf]
  %v52 = vunpack.c.l.b16 %v18
  %v53 = vunpack.c.h.b16 %v18
  %v54 = vpack.c.b16 %v52, %v52
  %v55 = vpack.c.b16 %v53, %v53
  %v90 = vunpack.c.l.b16 %v19
  %v91 = vunpack.c.l.b16 %v20
  %v92 = vunpack.c.l.b16 %v21
  %v93 = vunpack.c.l.b16 %v22
  %v94 = vunpack.c.l.b16 %v23
  %v95 = vunpack.c.l.b16 %v24
  %v96 = vunpack.c.l.b16 %v25
  %v97 = vunpack.c.l.b16 %v26
  %v98 = vunpack.c.l.b16 %v27
  %v99 = vunpack.c.l.b16 %v28
  %v100 = vunpack.c.l.b16 %v29
  %v101 = vunpack.c.l.b16 %v30
  %v102 = vunpack.c.l.b16 %v31
  %v103 = vunpack.c.l.b16 %v32
  %v104 = vunpack.c.l.b16 %v33
  %v105 = vunpack.c.l.b16 %v34
  %v106 = vunpack.c.l.b16 %v35
  %v107 = vunpack.c.l.b16 %v36
  %v108 = vunpack.c.l.b16 %v37
  %v109 = vunpack.c.l.b16 %v38
  %v110 = vunpack.c.l.b16 %v39
  %v111 = vunpack.c.l.b16 %v40
  %v112 = vunpack.c.l.b16 %v41
  %v113 = vunpack.c.l.b16 %v42
  %v114 = vunpack.c.l.b16 %v43
  %v115 = vunpack.c.l.b16 %v44
  %v116 = vunpack.c.l.b16 %v45
  %v117 = vunpack.c.l.b16 %v46
  %v118 = vunpack.c.l.b16 %v47
  %v119 = vunpack.c.l.b16 %v48
  %v120 = vunpack.c.l.b16 %v49
  %v121 = vunpack.c.l.b16 %v50
  %v122 = vpack.c.b16 %v91, %v90
  %v123 = vpack.c.b16 %v93, %v92
  %v124 = vpack.c.b16 %v95, %v94
  %v125 = vpack.c.b16 %v97, %v96
  %v126 = vpack.c.b16 %v99, %v98
  %v127 = vpack.c.b16 %v101, %v100
  %v128 = vpack.c.b16 %v103, %v102
  %v129 = vpack.c.b16 %v105, %v104
  %v130 = vpack.c.b16 %v107, %v106
  %v131 = vpack.c.b16 %v109, %v108
  %v132 = vpack.c.b16 %v111, %v110
  %v133 = vpack.c.b16 %v113, %v112
  %v134 = vpack.c.b16 %v115, %v114
  %v135 = vpack.c.b16 %v117, %v116
  %v136 = vpack.c.b16 %v119, %v118
  %v137 = vpack.c.b16 %v121, %v120
  %154 = vmatprep.subr.bf16.mxu0 0
  %155 = vmatpush1.bf16.msra.mxu0 %v122
  %156 = vmatprep.subr.bf16.mxu0 0
  %157 = vmatpush1.bf16.msra.mxu0 %v123
  %158 = vmatprep.subr.bf16.mxu0 0
  %159 = vmatpush1.bf16.msra.mxu0 %v124
  %160 = vmatprep.subr.bf16.mxu0 0
  %161 = vmatpush1.bf16.msra.mxu0 %v125
  %162 = vmatprep.subr.bf16.mxu0 0
  %163 = vmatpush1.bf16.msra.mxu0 %v126
  %164 = vmatprep.subr.bf16.mxu0 0
  %165 = vmatpush1.bf16.msra.mxu0 %v127
  %166 = vmatprep.subr.bf16.mxu0 0
  %167 = vmatpush1.bf16.msra.mxu0 %v128
  %168 = vmatprep.subr.bf16.mxu0 0
  %169 = vmatpush1.bf16.msra.mxu0 %v129
  %170 = vmatprep.subr.bf16.mxu0 0
  %171 = vmatpush1.bf16.msra.mxu0 %v130
  %172 = vmatprep.subr.bf16.mxu0 0
  %173 = vmatpush1.bf16.msra.mxu0 %v131
  %174 = vmatprep.subr.bf16.mxu0 0
  %175 = vmatpush1.bf16.msra.mxu0 %v132
  %176 = vmatprep.subr.bf16.mxu0 0
  %177 = vmatpush1.bf16.msra.mxu0 %v133
  %178 = vmatprep.subr.bf16.mxu0 0
  %179 = vmatpush1.bf16.msra.mxu0 %v134
  %180 = vmatprep.subr.bf16.mxu0 0
  %181 = vmatpush1.bf16.msra.mxu0 %v135
  %182 = vmatprep.subr.bf16.mxu0 0
  %183 = vmatpush1.bf16.msra.mxu0 %v136
  %184 = vmatprep.subr.bf16.mxu0 0
  %185 = vmatpush1.bf16.msra.mxu0 %v137
  %186 = vmatprep.mubr.bf16.mxu0 %v55
  %187 = vmatmul.mubr.bf16.gmra.mrb[0].mxu0 %v54
  %v188 = vpop.f32.mrb[0].mxu0
  %v189 = vadd.f32 0.0, %v188
  %v190 = vpop.f32.mrb[0].mxu0
  %v191 = vpop.f32.mrb[0].mxu0
  %v192 = vpop.f32.mrb[0].mxu0
  %193 = vdwg.mxu0
  %v194 = vadd.f32 %v17, %v189
  %195 = vst [vmem:[#allocation2] sm:$0xff] %v194
  // Predicated region
  $region14: #{mapped_avg_pool.1} parent=0 // pred_check
    %p196 = pneg %p12
  $region15: #{mapped_avg_pool.1} parent=0 // pred_check_branch
    %198 = sbr.rel (%p196) target = $region17
  $region16: #{mapped_avg_pool.1} parent=0 // pred_region
    %v199 = vld [vmem:[#allocation2] sm:$0xff]
    %200 = vst [vmem:[%s2] sm:$0xff] %v199
  $region17: #{mapped_avg_pool.1} parent=0 // pred_fallthru
    _
  // Predicated region
  $region18: #{mapped_avg_pool.1} parent=0 // pred_check
    _
  $region19: #{mapped_avg_pool.1} parent=0 // pred_check_branch
    %202 = sbr.rel (0) target = $region21
  $region20: #{mapped_avg_pool.1} parent=0 // pred_region
    _
  $region21: #{mapped_avg_pool.1} parent=0 // pred_fallthru
    _
  // Predicated region
  $region22: #{mapped_avg_pool.1} parent=0 // pred_check
    _
  $region23: #{mapped_avg_pool.1} parent=0 // pred_check_branch
    %204 = sbr.rel (0) target = $region25
  $region24: #{mapped_avg_pool.1} parent=0 // pred_region
    _
  $region25: #{mapped_avg_pool.1} parent=0 // pred_fallthru
    _

</llo_original>
